<compile_context>
chip_gen: v7x
topology: tpu7x:2x2x1
jax: 0.10.0
libtpu: 0.0.40
codegen_flags: <defaults>
</compile_context>

<pallas_src>
import numpy as np

import jax
import jax.numpy as jnp
from jax.experimental import pallas as pl
from jax.experimental.pallas import tpu as pltpu

# ----------------------------- hyper-params ---------------------------------
BATCH   = 2
C_IN    = 4
C_OUT   = 8
SEQ     = 16
KERNEL  = 5
STRIDE  = 1
PAD     = 2
H1      = 32                   # linear_layer = [C_OUT*SEQ, 32, 1]
H2      = 1
LEAKY   = 0.2
BN_EPS  = 1e-5

CL      = C_OUT * SEQ          # 128 = flattened conv-output width (lane-dense)
CIN_L   = C_IN * SEQ           # 64  = flattened input width

# Packed parameter slab row layout (all offsets / sizes are multiples of 8):
_R_WTOEP = 0                   # rows   0: 64  -> W_toep      (64, 128)
_R_W1    = _R_WTOEP + CIN_L    # rows  64:192  -> w1 padded   (128, 128)
_R_S     = _R_W1 + CL          # rows 192:320  -> S selector  (128, 128)
_R_ST    = _R_S + CL           # rows 320:448  -> S transpose (128, 128)
_R_VEC   = _R_ST + CL          # rows 448:456  -> small vecs  (8, 128)
_SLAB_ROWS = _R_VEC + 8        # 456


# ------------------------------ Pallas kernel -------------------------------
def disc_kernel(x_ref, p_ref, out_ref):
    # x_ref : (N, C_IN*SEQ)    flattened NCL input (column index = ci*SEQ + l)
    # p_ref : (456, 128)       packed parameter slab (see prepare_params)
    x = x_ref[...]                                              # (2, 64)

    w_toep = p_ref[_R_WTOEP:_R_WTOEP + CIN_L, :]                # (64, 128)
    w1k    = p_ref[_R_W1:_R_W1 + CL, :]                         # (128, 128)
    s_sel  = p_ref[_R_S:_R_S + CL, :]                           # (128, 128)
    s_t    = p_ref[_R_ST:_R_ST + CL, :]                         # (128, 128)
    vec    = p_ref[_R_VEC:_R_VEC + 8, :]                        # (8, 128)

    b_conv = vec[0:1, :]                                        # lane-expanded (co*SEQ+l)
    gamma  = vec[1:2, :]
    beta   = vec[2:3, :]
    b1     = vec[3:4, :]                                        # zero-padded to 128
    w2row  = vec[4:5, :]                                        # zero-padded to 128
    b2     = vec[5:6, 0:1]                                      # (1, 1)

    # ---- Conv1d (padding=2, stride=1) as one Toeplitz matmul ----
    # Output layout is channel-major (co*SEQ + l) == PyTorch Flatten order.
    conv = jnp.dot(x, w_toep, preferred_element_type=jnp.float32) + b_conv   # (2, 128)

    # ---- BatchNorm1d, training-mode batch statistics, fully lane-wise ----
    # Per-channel reduction via one-hot selector matmuls (MXU), broadcast back via S^T.
    inv_nl = 1.0 / (BATCH * SEQ)
    sums = jnp.dot(conv, s_sel, preferred_element_type=jnp.float32)          # (2, 128)
    mean_ch = jnp.sum(sums, axis=0, keepdims=True) * inv_nl                  # (1, 128)
    mean_b = jnp.dot(mean_ch, s_t, preferred_element_type=jnp.float32)       # (1, 128)
    centered = conv - mean_b
    sq = centered * centered
    var_sums = jnp.dot(sq, s_sel, preferred_element_type=jnp.float32)        # (2, 128)
    var_ch = jnp.sum(var_sums, axis=0, keepdims=True) * inv_nl               # (1, 128)
    inv_ch = jax.lax.rsqrt(var_ch + BN_EPS)                                  # (1, 128)
    inv_b = jnp.dot(inv_ch, s_t, preferred_element_type=jnp.float32)         # (1, 128)
    y = centered * inv_b * gamma + beta                                      # (2, 128)

    # ---- LeakyReLU(0.2) ----
    y = jnp.where(y > 0, y, LEAKY * y)

    # ---- Flatten (already in co*SEQ+l layout) + Linear(128->32, zero-padded to 128) ----
    h1 = jnp.dot(y, w1k, preferred_element_type=jnp.float32) + b1            # (2, 128)
    h1 = jnp.where(h1 > 0, h1, LEAKY * h1)                                   # pad lanes stay 0

    # ---- Linear(32->1) + LeakyReLU: lane reduction against zero-padded w2 row ----
    h2 = jnp.sum(h1 * w2row, axis=1, keepdims=True) + b2                     # (2, 1)
    h2 = jnp.where(h2 > 0, h2, LEAKY * h2)

    # ---- Sigmoid (exact 1/(1+exp(-x)); 2 outputs, EUP-approx buys nothing) ----
    out_ref[...] = (1.0 / (1.0 + jnp.exp(-h2))).astype(out_ref.dtype)


# ---------------------- one-time parameter preprocessing ---------------------
def prepare_params(params):
    """Run ONCE at parameter-init time (NOT on the per-call hot path)."""
    w_conv = np.asarray(params["w_conv"], np.float32)           # (C_OUT, C_IN, K)
    b_conv = np.asarray(params["b_conv"], np.float32)
    gamma  = np.asarray(params["gamma"],  np.float32)
    beta   = np.asarray(params["beta"],   np.float32)
    w1     = np.asarray(params["w1"],     np.float32)           # (H1, C_OUT*SEQ), col = co*SEQ+l
    b1     = np.asarray(params["b1"],     np.float32)
    w2     = np.asarray(params["w2"],     np.float32)           # (H2, H1)
    b2     = np.asarray(params["b2"],     np.float32)

    # Toeplitz conv weight: absorbs zero padding, tap order, and NCL layout.
    # conv_flat[n, co*SEQ+l_out] = sum_{ci,k} x_flat[n, ci*SEQ+l_in] * w_conv[co,ci,k],
    # l_in = l_out - PAD + k (rows outside [0,SEQ) are the implicit zero padding).
    w_toep = np.zeros((CIN_L, CL), np.float32)
    for k in range(KERNEL):
        for l_out in range(SEQ):
            l_in = l_out - PAD + k
            if 0 <= l_in < SEQ:
                for ci in range(C_IN):
                    for co in range(C_OUT):
                        w_toep[ci * SEQ + l_in, co * SEQ + l_out] = w_conv[co, ci, k]

    # First Linear: PyTorch column order is co*SEQ+l == our conv layout -> plain
    # transpose, zero-padded to 128 output lanes for a lane-dense h1.
    w1k = np.zeros((CL, 128), np.float32)
    w1k[:, :H1] = w1.T

    # One-hot channel selector (128x128, lanes 0:8 used) and its transpose.
    s_sel = np.zeros((CL, 128), np.float32)
    for co in range(C_OUT):
        s_sel[co * SEQ:(co + 1) * SEQ, co] = 1.0
    s_t = s_sel.T.copy()

    # Small vectors, lane-expanded / zero-padded to 128.
    vec = np.zeros((8, 128), np.float32)
    vec[0, :] = np.repeat(b_conv, SEQ)
    vec[1, :] = np.repeat(gamma, SEQ)
    vec[2, :] = np.repeat(beta, SEQ)
    vec[3, :H1] = b1
    vec[4, :H1] = w2[0]
    vec[5, 0] = b2[0]

    slab = np.concatenate([w_toep, w1k, s_sel, s_t, vec], axis=0)  # (456, 128)
    assert slab.shape == (_SLAB_ROWS, 128)
    return {"slab": jnp.asarray(slab)}


# ------------------------------ hot-path wrapper ------------------------------
_VMEM = pl.BlockSpec(memory_space=pltpu.MemorySpace.VMEM)


def _forward(x_ncl, slab):
    """x_ncl: (N, C_in, L) float32, PyTorch NCL layout."""
    # Row-major reshape (no transpose, no copy) -- the Toeplitz weight absorbs layout.
    x_flat = x_ncl.reshape(BATCH, CIN_L)
    return pl.pallas_call(
        disc_kernel,
        out_shape=jax.ShapeDtypeStruct((BATCH, H2), jnp.float32),
        in_specs=[_VMEM, _VMEM],
        out_specs=_VMEM,
    )(x_flat, slab)


_forward_jit = jax.jit(_forward)


def raw_discriminator_pallas(x_ncl, prepped):
    return _forward_jit(x_ncl, prepped["slab"])


# --------------------------- pure-JAX reference ------------------------------
def reference(x_ncl, params):
    y = jax.lax.conv_general_dilated(
        x_ncl, params["w_conv"], window_strides=(STRIDE,), padding=[(PAD, PAD)],
        dimension_numbers=("NCH", "OIH", "NCH"))
    y = y + params["b_conv"][None, :, None]
    mean = jnp.mean(y, axis=(0, 2), keepdims=True)
    var = jnp.mean((y - mean) ** 2, axis=(0, 2), keepdims=True)   # biased (training mode)
    y = (y - mean) / jnp.sqrt(var + BN_EPS)
    y = y * params["gamma"][None, :, None] + params["beta"][None, :, None]
    y = jnp.where(y > 0, y, LEAKY * y)
    y = y.reshape(x_ncl.shape[0], -1)                             # nn.Flatten (channel-major)
    y = y @ params["w1"].T + params["b1"]
    y = jnp.where(y > 0, y, LEAKY * y)
    y = y @ params["w2"].T + params["b2"]
    y = jnp.where(y > 0, y, LEAKY * y)
    return jax.nn.sigmoid(y)


# --------------------------------- main --------------------------------------
if __name__ == "__main__":
    key = jax.random.PRNGKey(0)
    keys = jax.random.split(key, 8)

    params = {
        "w_conv": 0.2 * jax.random.normal(keys[0], (C_OUT, C_IN, KERNEL), jnp.float32),
        "b_conv": 0.1 * jax.random.normal(keys[1], (C_OUT,), jnp.float32),
        "gamma":  jnp.ones((C_OUT,), jnp.float32),                # BatchNorm1d default init
        "beta":   jnp.zeros((C_OUT,), jnp.float32),
        "w1":     0.1 * jax.random.normal(keys[2], (H1, C_OUT * SEQ), jnp.float32),
        "b1":     0.1 * jax.random.normal(keys[3], (H1,), jnp.float32),
        "w2":     0.1 * jax.random.normal(keys[4], (H2, H1), jnp.float32),
        "b2":     0.1 * jax.random.normal(keys[5], (H2,), jnp.float32),
    }
    x = jax.random.normal(keys[6], (BATCH, C_IN, SEQ), jnp.float32)   # NCL input

    prepped = jax.tree_util.tree_map(jax.block_until_ready, prepare_params(params))

    out = jax.block_until_ready(raw_discriminator_pallas(x, prepped))
    ref = jax.block_until_ready(reference(x, params))

    assert out.shape == (BATCH, H2), out.shape
    assert jnp.allclose(out, ref, atol=1e-5, rtol=1e-5), (out, ref)

    # TODO(synk): dropout / pool / closing are configured off (None) in this param set,
    # matching the common rawDiscriminator configuration; they are not emitted.
    print("KERNEL_OK")
</pallas_src>

<mosaic_0001>
module attributes {stable_mosaic.version = 11 : i64} {
  func.func @disc_kernel(%arg0: memref<2x64xf32, #tpu.memory_space<vmem>>, %arg1: memref<456x128xf32, #tpu.memory_space<vmem>>, %arg2: memref<2x1xf32, #tpu.memory_space<vmem>>) attributes {dimension_semantics = [], scalar_prefetch = 0 : i64, scratch_operands = 0 : i64, tpu.core_type = #tpu.core_type<tc>} {
    %c0 = arith.constant 0 : index
    %c0_0 = arith.constant 0 : index
    %0 = vector.load %arg0[%c0, %c0_0] : memref<2x64xf32, #tpu.memory_space<vmem>>, vector<2x64xf32>
    %c0_1 = arith.constant 0 : index
    %c0_2 = arith.constant 0 : index
    %1 = vector.load %arg1[%c0_1, %c0_2] : memref<456x128xf32, #tpu.memory_space<vmem>>, vector<64x128xf32>
    %c64 = arith.constant 64 : index
    %c0_3 = arith.constant 0 : index
    %2 = vector.load %arg1[%c64, %c0_3] : memref<456x128xf32, #tpu.memory_space<vmem>>, vector<128x128xf32>
    %c192 = arith.constant 192 : index
    %c0_4 = arith.constant 0 : index
    %3 = vector.load %arg1[%c192, %c0_4] : memref<456x128xf32, #tpu.memory_space<vmem>>, vector<128x128xf32>
    %c320 = arith.constant 320 : index
    %c0_5 = arith.constant 0 : index
    %4 = vector.load %arg1[%c320, %c0_5] : memref<456x128xf32, #tpu.memory_space<vmem>>, vector<128x128xf32>
    %c448 = arith.constant 448 : index
    %c0_6 = arith.constant 0 : index
    %5 = vector.load %arg1[%c448, %c0_6] : memref<456x128xf32, #tpu.memory_space<vmem>>, vector<8x128xf32>
    %6 = vector.extract_strided_slice %5 {offsets = [0, 0], sizes = [1, 128], strides = [1, 1]} : vector<8x128xf32> to vector<1x128xf32>
    %7 = vector.extract_strided_slice %5 {offsets = [1, 0], sizes = [1, 128], strides = [1, 1]} : vector<8x128xf32> to vector<1x128xf32>
    %8 = vector.extract_strided_slice %5 {offsets = [2, 0], sizes = [1, 128], strides = [1, 1]} : vector<8x128xf32> to vector<1x128xf32>
    %9 = vector.extract_strided_slice %5 {offsets = [3, 0], sizes = [1, 128], strides = [1, 1]} : vector<8x128xf32> to vector<1x128xf32>
    %10 = vector.extract_strided_slice %5 {offsets = [4, 0], sizes = [1, 128], strides = [1, 1]} : vector<8x128xf32> to vector<1x128xf32>
    %11 = vector.extract_strided_slice %5 {offsets = [5, 0], sizes = [1, 1], strides = [1, 1]} : vector<8x128xf32> to vector<1x1xf32>
    %cst = arith.constant dense<0.000000e+00> : vector<2x128xf32>
    %12 = tpu.matmul %0, %1, %cst {dimension_numbers = #tpu.dot_dimension_numbers<[1], [0], [0], [1], [0, 0, 1, 1], [], []>} : vector<2x64xf32>, vector<64x128xf32>, vector<2x128xf32> -> vector<2x128xf32>
    %13 = vector.broadcast %6 : vector<1x128xf32> to vector<2x128xf32>
    %14 = arith.addf %12, %13 : vector<2x128xf32>
    %cst_7 = arith.constant dense<0.000000e+00> : vector<2x128xf32>
    %15 = tpu.matmul %14, %3, %cst_7 {dimension_numbers = #tpu.dot_dimension_numbers<[1], [0], [0], [1], [0, 0, 1, 1], [], []>} : vector<2x128xf32>, vector<128x128xf32>, vector<2x128xf32> -> vector<2x128xf32>
    %cst_8 = arith.constant dense<0.000000e+00> : vector<128xf32>
    %16 = vector.multi_reduction <add>, %15, %cst_8 [0] : vector<2x128xf32> to vector<128xf32>
    %17 = vector.shape_cast %16 : vector<128xf32> to vector<1x128xf32>
    %cst_9 = arith.constant 3.125000e-02 : f32
    %18 = vector.broadcast %cst_9 : f32 to vector<1x128xf32>
    %19 = arith.mulf %17, %18 : vector<1x128xf32>
    %cst_10 = arith.constant dense<0.000000e+00> : vector<1x128xf32>
    %20 = tpu.matmul %19, %4, %cst_10 {dimension_numbers = #tpu.dot_dimension_numbers<[1], [0], [0], [1], [0, 0, 1, 1], [], []>} : vector<1x128xf32>, vector<128x128xf32>, vector<1x128xf32> -> vector<1x128xf32>
    %21 = vector.broadcast %20 : vector<1x128xf32> to vector<2x128xf32>
    %22 = arith.subf %14, %21 : vector<2x128xf32>
    %23 = arith.mulf %22, %22 : vector<2x128xf32>
    %cst_11 = arith.constant dense<0.000000e+00> : vector<2x128xf32>
    %24 = tpu.matmul %23, %3, %cst_11 {dimension_numbers = #tpu.dot_dimension_numbers<[1], [0], [0], [1], [0, 0, 1, 1], [], []>} : vector<2x128xf32>, vector<128x128xf32>, vector<2x128xf32> -> vector<2x128xf32>
    %cst_12 = arith.constant dense<0.000000e+00> : vector<128xf32>
    %25 = vector.multi_reduction <add>, %24, %cst_12 [0] : vector<2x128xf32> to vector<128xf32>
    %26 = vector.shape_cast %25 : vector<128xf32> to vector<1x128xf32>
    %cst_13 = arith.constant 3.125000e-02 : f32
    %27 = vector.broadcast %cst_13 : f32 to vector<1x128xf32>
    %28 = arith.mulf %26, %27 : vector<1x128xf32>
    %cst_14 = arith.constant 9.99999974E-6 : f32
    %29 = vector.broadcast %cst_14 : f32 to vector<1x128xf32>
    %30 = arith.addf %28, %29 : vector<1x128xf32>
    %31 = math.rsqrt %30 : vector<1x128xf32>
    %cst_15 = arith.constant dense<0.000000e+00> : vector<1x128xf32>
    %32 = tpu.matmul %31, %4, %cst_15 {dimension_numbers = #tpu.dot_dimension_numbers<[1], [0], [0], [1], [0, 0, 1, 1], [], []>} : vector<1x128xf32>, vector<128x128xf32>, vector<1x128xf32> -> vector<1x128xf32>
    %33 = vector.broadcast %32 : vector<1x128xf32> to vector<2x128xf32>
    %34 = arith.mulf %22, %33 : vector<2x128xf32>
    %35 = vector.broadcast %7 : vector<1x128xf32> to vector<2x128xf32>
    %36 = arith.mulf %34, %35 : vector<2x128xf32>
    %37 = vector.broadcast %8 : vector<1x128xf32> to vector<2x128xf32>
    %38 = arith.addf %36, %37 : vector<2x128xf32>
    %cst_16 = arith.constant 0.000000e+00 : f32
    %39 = vector.broadcast %cst_16 : f32 to vector<2x128xf32>
    %40 = arith.cmpf ogt, %38, %39 : vector<2x128xf32>
    %cst_17 = arith.constant 2.000000e-01 : f32
    %41 = vector.broadcast %cst_17 : f32 to vector<2x128xf32>
    %42 = arith.mulf %41, %38 : vector<2x128xf32>
    %43 = arith.select %40, %38, %42 : vector<2x128xi1>, vector<2x128xf32>
    %cst_18 = arith.constant dense<0.000000e+00> : vector<2x128xf32>
    %44 = tpu.matmul %43, %2, %cst_18 {dimension_numbers = #tpu.dot_dimension_numbers<[1], [0], [0], [1], [0, 0, 1, 1], [], []>} : vector<2x128xf32>, vector<128x128xf32>, vector<2x128xf32> -> vector<2x128xf32>
    %45 = vector.broadcast %9 : vector<1x128xf32> to vector<2x128xf32>
    %46 = arith.addf %44, %45 : vector<2x128xf32>
    %cst_19 = arith.constant 0.000000e+00 : f32
    %47 = vector.broadcast %cst_19 : f32 to vector<2x128xf32>
    %48 = arith.cmpf ogt, %46, %47 : vector<2x128xf32>
    %cst_20 = arith.constant 2.000000e-01 : f32
    %49 = vector.broadcast %cst_20 : f32 to vector<2x128xf32>
    %50 = arith.mulf %49, %46 : vector<2x128xf32>
    %51 = arith.select %48, %46, %50 : vector<2x128xi1>, vector<2x128xf32>
    %52 = vector.broadcast %10 : vector<1x128xf32> to vector<2x128xf32>
    %53 = arith.mulf %51, %52 : vector<2x128xf32>
    %cst_21 = arith.constant dense<0.000000e+00> : vector<2xf32>
    %54 = vector.multi_reduction <add>, %53, %cst_21 [1] : vector<2x128xf32> to vector<2xf32>
    %55 = vector.shape_cast %54 : vector<2xf32> to vector<2x1xf32>
    %56 = vector.broadcast %11 : vector<1x1xf32> to vector<2x1xf32>
    %57 = arith.addf %55, %56 : vector<2x1xf32>
    %cst_22 = arith.constant 0.000000e+00 : f32
    %58 = vector.broadcast %cst_22 : f32 to vector<2x1xf32>
    %59 = arith.cmpf ogt, %57, %58 : vector<2x1xf32>
    %cst_23 = arith.constant 2.000000e-01 : f32
    %60 = vector.broadcast %cst_23 : f32 to vector<2x1xf32>
    %61 = arith.mulf %60, %57 : vector<2x1xf32>
    %62 = arith.select %59, %57, %61 : vector<2x1xi1>, vector<2x1xf32>
    %cst_24 = arith.constant 0.000000e+00 : f32
    %63 = vector.broadcast %cst_24 : f32 to vector<2x1xf32>
    %64 = arith.subf %63, %62 : vector<2x1xf32>
    %65 = math.exp %64 : vector<2x1xf32>
    %cst_25 = arith.constant 1.000000e+00 : f32
    %66 = vector.broadcast %cst_25 : f32 to vector<2x1xf32>
    %67 = arith.addf %66, %65 : vector<2x1xf32>
    %cst_26 = arith.constant 1.000000e+00 : f32
    %68 = vector.broadcast %cst_26 : f32 to vector<2x1xf32>
    %69 = arith.divf %68, %67 : vector<2x1xf32>
    %c0_27 = arith.constant 0 : index
    %c0_28 = arith.constant 0 : index
    %70 = vector.load %arg2[%c0_27, %c0_28] : memref<2x1xf32, #tpu.memory_space<vmem>>, vector<2x1xf32>
    tpu.vector_store %arg2[%c0_27, %c0_28], %69 {strides = array<i32>} : memref<2x1xf32, #tpu.memory_space<vmem>>, vector<2x1xf32>,
    return
  }
}

</mosaic_0001>

<llo_original>
// kernel: _forward.1
$region0: #{_forward.1}
  #allocation0 [shape = 'u32[]', space=smem, size = 0x4, offset = 0x4, fixed_abs, tag = 'smem constant byte address 0x4 - core index']
  #allocation1 [shape = 'u32[144,128]{1,0:T(1,128)}', space=vmem, size = 0x12000, scoped, tag = 'internal scratch']
  %s0 = inlined_call_operand.vmem [shape: f32[2,64], index: 0, kind: input, shape index: {}]
  %s1 = inlined_call_operand.hbm [shape: f32[456,128], index: 1, kind: input, shape index: {}]
  %s2 = inlined_call_operand.vmem [shape: f32[2,1], index: 2, kind: output, shape index: {}]
  %s3 = sld [smem:[#allocation0]]
  $region22: #{_forward.1} parent=0
    _
  %s5 = ssub.s32 1, %s3
  %s6 = scalar_select 0, %s5, %s3
  $region1: #{_forward.1} parent=0
    #allocation2 [shape = 'u8[233472]{0}', space=vmem, size = 0x39000, scoped, tag = 'input window, operand 1, single buffered']
    #allocation3 [shape = 's32[1]{0}', space=sflag, size = 0x4, scoped, tag = 'scoped memory for _forward.1']
    %7 = vsyncpa [#allocation3], 0
    // Predicated region
    $region2: #{_forward.1} parent=1 // pred_check
      _
    $region3: #{_forward.1} parent=1 // pred_check_branch
      %9 = sbr.rel (0) target = $region5
    $region4: #{_forward.1} parent=1 // pred_region
      _
    $region5: #{_forward.1} parent=1 // pred_fallthru
      _
    // Predicated region
    $region6: #{_forward.1} parent=1 // pred_check
      _
    $region7: #{_forward.1} parent=1 // pred_check_branch
      %11 = sbr.rel (0) target = $region9
    $region8: #{_forward.1} parent=1 // pred_region
      %s13 = ssub.s32 7296, 7296
      %14 = vsyncadd [#allocation3], %s13
      %s15 = sshll.u32 [#allocation2], 4
      %s16 = int_to_ptr.vmem [resolvable:$true] %s15
      %21 = dma.hbm_to_vmem [thread:$0]  %s1, 7296, %s16, [#allocation3], 128, 128, 8
    $region9: #{_forward.1} parent=1 // pred_fallthru
      _
    // Predicated region
    $region10: #{_forward.1} parent=1 // pred_check
      _
    $region11: #{_forward.1} parent=1 // pred_check_branch
      %23 = sbr.rel (0) target = $region13
    $region12: #{_forward.1} parent=1 // pred_region
      %24 = dma.done [#allocation3], 7296
    $region13: #{_forward.1} parent=1 // pred_fallthru
      _
    %v25 = vld [vmem:[%s0] sm:$0x3]
    %v26 = vld [vmem:[#allocation2] sm:$0xff]
    %v27 = vld [vmem:[#allocation2 + $0x8] sm:$0xff]
    %v28 = vld [vmem:[#allocation2 + $0x10] sm:$0xff]
    %v29 = vld [vmem:[#allocation2 + $0x18] sm:$0xff]
    %v30 = vld [vmem:[#allocation2 + $0x20] sm:$0xff]
    %v31 = vld [vmem:[#allocation2 + $0x28] sm:$0xff]
    %v32 = vld [vmem:[#allocation2 + $0x30] sm:$0xff]
    %v33 = vld [vmem:[#allocation2 + $0x38] sm:$0xff]
    %v34 = vld [vmem:[#allocation2 + $0x40] sm:$0xff]
    %v35 = vld [vmem:[#allocation2 + $0x48] sm:$0xff]
    %v36 = vld [vmem:[#allocation2 + $0x50] sm:$0xff]
    %v37 = vld [vmem:[#allocation2 + $0x58] sm:$0xff]
    %v38 = vld [vmem:[#allocation2 + $0x60] sm:$0xff]
    %v39 = vld [vmem:[#allocation2 + $0x68] sm:$0xff]
    %v40 = vld [vmem:[#allocation2 + $0x70] sm:$0xff]
    %v41 = vld [vmem:[#allocation2 + $0x78] sm:$0xff]
    %v42 = vld [vmem:[#allocation2 + $0x80] sm:$0xff]
    %v43 = vld [vmem:[#allocation2 + $0x88] sm:$0xff]
    %v44 = vld [vmem:[#allocation2 + $0x90] sm:$0xff]
    %v45 = vld [vmem:[#allocation2 + $0x98] sm:$0xff]
    %v46 = vld [vmem:[#allocation2 + $0xa0] sm:$0xff]
    %v47 = vld [vmem:[#allocation2 + $0xa8] sm:$0xff]
    %v48 = vld [vmem:[#allocation2 + $0xb0] sm:$0xff]
    %v49 = vld [vmem:[#allocation2 + $0xb8] sm:$0xff]
    %v50 = vld [vmem:[#allocation2 + $0xc0] sm:$0xff]
    %v51 = vld [vmem:[#allocation2 + $0xc8] sm:$0xff]
    %v52 = vld [vmem:[#allocation2 + $0xd0] sm:$0xff]
    %v53 = vld [vmem:[#allocation2 + $0xd8] sm:$0xff]
    %v54 = vld [vmem:[#allocation2 + $0xe0] sm:$0xff]
    %v55 = vld [vmem:[#allocation2 + $0xe8] sm:$0xff]
    %v56 = vld [vmem:[#allocation2 + $0xf0] sm:$0xff]
    %v57 = vld [vmem:[#allocation2 + $0xf8] sm:$0xff]
    %v58 = vld [vmem:[#allocation2 + $0x100] sm:$0xff]
    %v59 = vld [vmem:[#allocation2 + $0x108] sm:$0xff]
    %v60 = vld [vmem:[#allocation2 + $0x110] sm:$0xff]
    %v61 = vld [vmem:[#allocation2 + $0x118] sm:$0xff]
    %v62 = vld [vmem:[#allocation2 + $0x120] sm:$0xff]
    %v63 = vld [vmem:[#allocation2 + $0x128] sm:$0xff]
    %v64 = vld [vmem:[#allocation2 + $0x130] sm:$0xff]
    %v65 = vld [vmem:[#allocation2 + $0x138] sm:$0xff]
    %v66 = vld [vmem:[#allocation2 + $0x140] sm:$0xff]
    %v67 = vld [vmem:[#allocation2 + $0x148] sm:$0xff]
    %v68 = vld [vmem:[#allocation2 + $0x150] sm:$0xff]
    %v69 = vld [vmem:[#allocation2 + $0x158] sm:$0xff]
    %v70 = vld [vmem:[#allocation2 + $0x160] sm:$0xff]
    %v71 = vld [vmem:[#allocation2 + $0x168] sm:$0xff]
    %v72 = vld [vmem:[#allocation2 + $0x170] sm:$0xff]
    %v73 = vld [vmem:[#allocation2 + $0x178] sm:$0xff]
    %v74 = vld [vmem:[#allocation2 + $0x180] sm:$0xff]
    %v75 = vld [vmem:[#allocation2 + $0x188] sm:$0xff]
    %v76 = vld [vmem:[#allocation2 + $0x190] sm:$0xff]
    %v77 = vld [vmem:[#allocation2 + $0x198] sm:$0xff]
    %v78 = vld [vmem:[#allocation2 + $0x1a0] sm:$0xff]
    %v79 = vld [vmem:[#allocation2 + $0x1a8] sm:$0xff]
    %v80 = vld [vmem:[#allocation2 + $0x1b0] sm:$0xff]
    %v81 = vld [vmem:[#allocation2 + $0x1b8] sm:$0xff]
    %v82 = vld [vmem:[#allocation2 + $0x1c0] sm:$0xff]
    %v83 = vlaneseq
    %v84 = vshrl.u32 %v83, 7
    %v85 = vsub.s32 0, %v84
    %v86 = vrot.slane %v82, %v85
    %vm87 = vcmask 523264
    %v89 = vsel %vm87, %v25, 0
    %91 = vmatprep.subr.mxu0 0.0
    %92 = vmatpush1.msra.mxu0 %v26
    %93 = vmatprep.subr.mxu0 0.0
    %94 = vmatpush1.msra.mxu0 %v27
    %95 = vmatprep.subr.mxu0 0.0
    %96 = vmatpush1.msra.mxu0 %v28
    %97 = vmatprep.subr.mxu0 0.0
    %98 = vmatpush1.msra.mxu0 %v29
    %99 = vmatprep.subr.mxu0 0.0
    %100 = vmatpush1.msra.mxu0 %v30
    %101 = vmatprep.subr.mxu0 0.0
    %102 = vmatpush1.msra.mxu0 %v31
    %103 = vmatprep.subr.mxu0 0.0
    %104 = vmatpush1.msra.mxu0 %v32
    %105 = vmatprep.subr.mxu0 0.0
    %106 = vmatpush1.msra.mxu0 %v33
    %107 = vmatprep.subr.mxu0 0.0
    %108 = vmatpush1.msra.mxu0 0.0
    %109 = vmatprep.subr.mxu0 0.0
    %110 = vmatpush1.msra.mxu0 0.0
    %111 = vmatprep.subr.mxu0 0.0
    %112 = vmatpush1.msra.mxu0 0.0
    %113 = vmatprep.subr.mxu0 0.0
    %114 = vmatpush1.msra.mxu0 0.0
    %115 = vmatprep.subr.mxu0 0.0
    %116 = vmatpush1.msra.mxu0 0.0
    %117 = vmatprep.subr.mxu0 0.0
    %118 = vmatpush1.msra.mxu0 0.0
    %119 = vmatprep.subr.mxu0 0.0
    %120 = vmatpush1.msra.mxu0 0.0
    %121 = vmatprep.subr.mxu0 0.0
    %122 = vmatpush1.msra.mxu0 0.0
    %123 = vmatprep.subr.mxu0 0.0
    %124 = vmatpush1.msra.mxu0 0.0
    %125 = vmatprep.subr.mxu0 0.0
    %126 = vmatpush1.msra.mxu0 0.0
    %127 = vmatprep.subr.mxu0 0.0
    %128 = vmatpush1.msra.mxu0 0.0
    %129 = vmatprep.subr.mxu0 0.0
    %130 = vmatpush1.msra.mxu0 0.0
    %131 = vmatprep.subr.mxu0 0.0
    %132 = vmatpush1.msra.mxu0 0.0
    %133 = vmatprep.subr.mxu0 0.0
    %134 = vmatpush1.msra.mxu0 0.0
    %135 = vmatprep.subr.mxu0 0.0
    %136 = vmatpush1.msra.mxu0 0.0
    %137 = vmatprep.subr.mxu0 0.0
    %138 = vmatpush1.msra.mxu0 0.0
    %139 = vmatprep.subr.mxu0 0.0
    %140 = vmatpush1.msra.mxu0 0.0
    %141 = vmatprep.subr.mxu0 0.0
    %142 = vmatpush1.msra.mxu0 0.0
    %143 = vmatprep.subr.mxu0 0.0
    %144 = vmatpush1.msra.mxu0 0.0
    %145 = vmatprep.subr.mxu0 0.0
    %146 = vmatpush1.msra.mxu0 0.0
    %147 = vmatprep.subr.mxu0 0.0
    %148 = vmatpush1.msra.mxu0 0.0
    %149 = vmatprep.subr.mxu0 0.0
    %150 = vmatpush1.msra.mxu0 0.0
    %151 = vmatprep.subr.mxu0 0.0
    %152 = vmatpush1.msra.mxu0 0.0
    %153 = vmatprep.subr.mxu0 0.0
    %154 = vmatpush1.msra.mxu0 0.0
    %155 = vmatprep.mubr.f32.mxu0 0.0
    %156 = vmatmul.mubr.f32.gmra.mrb[0].mxu0 %v89
    %v157 = vpop.f32.mrb[0].mxu0
    %v158 = vadd.f32 %v86, %v157
    %v159 = vpop.f32.mrb[0].mxu0
    %160 = vdwg.mxu0
    %161 = vmatprep.subr.mxu0 0.0
    %162 = vmatpush1.msra.mxu0 %v50
    %163 = vmatprep.subr.mxu0 0.0
    %164 = vmatpush1.msra.mxu0 %v51
    %165 = vmatprep.subr.mxu0 0.0
    %166 = vmatpush1.msra.mxu0 %v52
    %167 = vmatprep.subr.mxu0 0.0
    %168 = vmatpush1.msra.mxu0 %v53
    %169 = vmatprep.subr.mxu0 0.0
    %170 = vmatpush1.msra.mxu0 %v54
    %171 = vmatprep.subr.mxu0 0.0
    %172 = vmatpush1.msra.mxu0 %v55
    %173 = vmatprep.subr.mxu0 0.0
    %174 = vmatpush1.msra.mxu0 %v56
    %175 = vmatprep.subr.mxu0 0.0
    %176 = vmatpush1.msra.mxu0 %v57
    %177 = vmatprep.subr.mxu0 0.0
    %178 = vmatpush1.msra.mxu0 %v58
    %179 = vmatprep.subr.mxu0 0.0
    %180 = vmatpush1.msra.mxu0 %v59
    %181 = vmatprep.subr.mxu0 0.0
    %182 = vmatpush1.msra.mxu0 %v60
    %183 = vmatprep.subr.mxu0 0.0
    %184 = vmatpush1.msra.mxu0 %v61
    %185 = vmatprep.subr.mxu0 0.0
    %186 = vmatpush1.msra.mxu0 %v62
    %187 = vmatprep.subr.mxu0 0.0
    %188 = vmatpush1.msra.mxu0 %v63
    %189 = vmatprep.subr.mxu0 0.0
    %190 = vmatpush1.msra.mxu0 %v64
    %191 = vmatprep.subr.mxu0 0.0
    %192 = vmatpush1.msra.mxu0 %v65
    %193 = vmatprep.subr.mxu0 0.0
    %194 = vmatpush1.msra.mxu0 0.0
    %195 = vmatprep.subr.mxu0 0.0
    %196 = vmatpush1.msra.mxu0 0.0
    %197 = vmatprep.subr.mxu0 0.0
    %198 = vmatpush1.msra.mxu0 0.0
    %199 = vmatprep.subr.mxu0 0.0
    %200 = vmatpush1.msra.mxu0 0.0
    %201 = vmatprep.subr.mxu0 0.0
    %202 = vmatpush1.msra.mxu0 0.0
    %203 = vmatprep.subr.mxu0 0.0
    %204 = vmatpush1.msra.mxu0 0.0
    %205 = vmatprep.subr.mxu0 0.0
    %206 = vmatpush1.msra.mxu0 0.0
    %207 = vmatprep.subr.mxu0 0.0
    %208 = vmatpush1.msra.mxu0 0.0
    %209 = vmatprep.subr.mxu0 0.0
    %210 = vmatpush1.msra.mxu0 0.0
    %211 = vmatprep.subr.mxu0 0.0
    %212 = vmatpush1.msra.mxu0 0.0
    %213 = vmatprep.subr.mxu0 0.0
    %214 = vmatpush1.msra.mxu0 0.0
    %215 = vmatprep.subr.mxu0 0.0
    %216 = vmatpush1.msra.mxu0 0.0
    %217 = vmatprep.subr.mxu0 0.0
    %218 = vmatpush1.msra.mxu0 0.0
    %219 = vmatprep.subr.mxu0 0.0
    %220 = vmatpush1.msra.mxu0 0.0
    %221 = vmatprep.subr.mxu0 0.0
    %222 = vmatpush1.msra.mxu0 0.0
    %223 = vmatprep.subr.mxu0 0.0
    %224 = vmatpush1.msra.mxu0 0.0
    %225 = vmatprep.mubr.f32.mxu0 0.0
    %226 = vmatmul.mubr.f32.gmra.mrb[0].mxu0 %v158
    %v227 = vpop.f32.mrb[0].mxu0
    %v228 = vadd.f32 0.0, %v227
    %v229 = vpop.f32.mrb[0].mxu0
    %230 = vdwg.mxu0
    %vm231 = vcmask 1041408
    %v232 = vsel %vm231, %v228, 0.0
    %v233 = vrot.slane %v232, 4
    %v234 = vadd.f32 %v232, %v233
    %v235 = vrot.slane %v234, 2
    %v236 = vadd.f32 %v234, %v235
    %v237 = vrot.slane %v236, 1
    %v238 = vadd.f32 %v236, %v237
    %v239 = vmul.f32 %v238, 0.03125
    %240 = vmatprep.subr.mxu0 0.0
    %241 = vmatpush1.msra.mxu0 %v66
    %242 = vmatprep.subr.mxu0 0.0
    %243 = vmatpush1.msra.mxu0 %v67
    %244 = vmatprep.subr.mxu0 0.0
    %245 = vmatpush1.msra.mxu0 %v68
    %246 = vmatprep.subr.mxu0 0.0
    %247 = vmatpush1.msra.mxu0 %v69
    %248 = vmatprep.subr.mxu0 0.0
    %249 = vmatpush1.msra.mxu0 %v70
    %250 = vmatprep.subr.mxu0 0.0
    %251 = vmatpush1.msra.mxu0 %v71
    %252 = vmatprep.subr.mxu0 0.0
    %253 = vmatpush1.msra.mxu0 %v72
    %254 = vmatprep.subr.mxu0 0.0
    %255 = vmatpush1.msra.mxu0 %v73
    %256 = vmatprep.subr.mxu0 0.0
    %257 = vmatpush1.msra.mxu0 %v74
    %258 = vmatprep.subr.mxu0 0.0
    %259 = vmatpush1.msra.mxu0 %v75
    %260 = vmatprep.subr.mxu0 0.0
    %261 = vmatpush1.msra.mxu0 %v76
    %262 = vmatprep.subr.mxu0 0.0
    %263 = vmatpush1.msra.mxu0 %v77
    %264 = vmatprep.subr.mxu0 0.0
    %265 = vmatpush1.msra.mxu0 %v78
    %266 = vmatprep.subr.mxu0 0.0
    %267 = vmatpush1.msra.mxu0 %v79
    %268 = vmatprep.subr.mxu0 0.0
    %269 = vmatpush1.msra.mxu0 %v80
    %270 = vmatprep.subr.mxu0 0.0
    %271 = vmatpush1.msra.mxu0 %v81
    %272 = vmatprep.subr.mxu0 0.0
    %273 = vmatpush1.msra.mxu0 0.0
    %274 = vmatprep.subr.mxu0 0.0
    %275 = vmatpush1.msra.mxu0 0.0
    %276 = vmatprep.subr.mxu0 0.0
    %277 = vmatpush1.msra.mxu0 0.0
    %278 = vmatprep.subr.mxu0 0.0
    %279 = vmatpush1.msra.mxu0 0.0
    %280 = vmatprep.subr.mxu0 0.0
    %281 = vmatpush1.msra.mxu0 0.0
    %282 = vmatprep.subr.mxu0 0.0
    %283 = vmatpush1.msra.mxu0 0.0
    %284 = vmatprep.subr.mxu0 0.0
    %285 = vmatpush1.msra.mxu0 0.0
    %286 = vmatprep.subr.mxu0 0.0
    %287 = vmatpush1.msra.mxu0 0.0
    %288 = vmatprep.subr.mxu0 0.0
    %289 = vmatpush1.msra.mxu0 0.0
    %290 = vmatprep.subr.mxu0 0.0
    %291 = vmatpush1.msra.mxu0 0.0
    %292 = vmatprep.subr.mxu0 0.0
    %293 = vmatpush1.msra.mxu0 0.0
    %294 = vmatprep.subr.mxu0 0.0
    %295 = vmatpush1.msra.mxu0 0.0
    %296 = vmatprep.subr.mxu0 0.0
    %297 = vmatpush1.msra.mxu0 0.0
    %298 = vmatprep.subr.mxu0 0.0
    %299 = vmatpush1.msra.mxu0 0.0
    %300 = vmatprep.subr.mxu0 0.0
    %301 = vmatpush1.msra.mxu0 0.0
    %302 = vmatprep.subr.mxu0 0.0
    %303 = vmatpush1.msra.mxu0 0.0
    %304 = vmatprep.mubr.f32.mxu0 0.0
    %305 = vmatmul.mubr.f32.gmra.mrb[0].mxu0 %v239
    %v306 = vpop.f32.mrb[0].mxu0
    %v307 = vadd.f32 0.0, %v306
    %v308 = vpop.f32.mrb[0].mxu0
    %309 = vdwg.mxu0
    %v310 = vlaneseq
    %v311 = vshrl.u32 %v310, 7
    %v312 = vsub.s32 0, %v311
    %v313 = vrot.slane %v307, %v312
    %v314 = vsub.f32 %v158, %v313
    %v315 = vmul.f32 %v314, %v314
    %316 = vmatprep.subr.mxu0 0.0
    %317 = vmatpush1.msra.mxu0 %v50
    %318 = vmatprep.subr.mxu0 0.0
    %319 = vmatpush1.msra.mxu0 %v51
    %320 = vmatprep.subr.mxu0 0.0
    %321 = vmatpush1.msra.mxu0 %v52
    %322 = vmatprep.subr.mxu0 0.0
    %323 = vmatpush1.msra.mxu0 %v53
    %324 = vmatprep.subr.mxu0 0.0
    %325 = vmatpush1.msra.mxu0 %v54
    %326 = vmatprep.subr.mxu0 0.0
    %327 = vmatpush1.msra.mxu0 %v55
    %328 = vmatprep.subr.mxu0 0.0
    %329 = vmatpush1.msra.mxu0 %v56
    %330 = vmatprep.subr.mxu0 0.0
    %331 = vmatpush1.msra.mxu0 %v57
    %332 = vmatprep.subr.mxu0 0.0
    %333 = vmatpush1.msra.mxu0 %v58
    %334 = vmatprep.subr.mxu0 0.0
    %335 = vmatpush1.msra.mxu0 %v59
    %336 = vmatprep.subr.mxu0 0.0
    %337 = vmatpush1.msra.mxu0 %v60
    %338 = vmatprep.subr.mxu0 0.0
    %339 = vmatpush1.msra.mxu0 %v61
    %340 = vmatprep.subr.mxu0 0.0
    %341 = vmatpush1.msra.mxu0 %v62
    %342 = vmatprep.subr.mxu0 0.0
    %343 = vmatpush1.msra.mxu0 %v63
    %344 = vmatprep.subr.mxu0 0.0
    %345 = vmatpush1.msra.mxu0 %v64
    %346 = vmatprep.subr.mxu0 0.0
    %347 = vmatpush1.msra.mxu0 %v65
    %348 = vmatprep.subr.mxu0 0.0
    %349 = vmatpush1.msra.mxu0 0.0
    %350 = vmatprep.subr.mxu0 0.0
    %351 = vmatpush1.msra.mxu0 0.0
    %352 = vmatprep.subr.mxu0 0.0
    %353 = vmatpush1.msra.mxu0 0.0
    %354 = vmatprep.subr.mxu0 0.0
    %355 = vmatpush1.msra.mxu0 0.0
    %356 = vmatprep.subr.mxu0 0.0
    %357 = vmatpush1.msra.mxu0 0.0
    %358 = vmatprep.subr.mxu0 0.0
    %359 = vmatpush1.msra.mxu0 0.0
    %360 = vmatprep.subr.mxu0 0.0
    %361 = vmatpush1.msra.mxu0 0.0
    %362 = vmatprep.subr.mxu0 0.0
    %363 = vmatpush1.msra.mxu0 0.0
    %364 = vmatprep.subr.mxu0 0.0
    %365 = vmatpush1.msra.mxu0 0.0
    %366 = vmatprep.subr.mxu0 0.0
    %367 = vmatpush1.msra.mxu0 0.0
    %368 = vmatprep.subr.mxu0 0.0
    %369 = vmatpush1.msra.mxu0 0.0
    %370 = vmatprep.subr.mxu0 0.0
    %371 = vmatpush1.msra.mxu0 0.0
    %372 = vmatprep.subr.mxu0 0.0
    %373 = vmatpush1.msra.mxu0 0.0
    %374 = vmatprep.subr.mxu0 0.0
    %375 = vmatpush1.msra.mxu0 0.0
    %376 = vmatprep.subr.mxu0 0.0
    %377 = vmatpush1.msra.mxu0 0.0
    %378 = vmatprep.subr.mxu0 0.0
    %379 = vmatpush1.msra.mxu0 0.0
    %380 = vmatprep.mubr.f32.mxu0 0.0
    %381 = vmatmul.mubr.f32.gmra.mrb[0].mxu0 %v315
    %v382 = vpop.f32.mrb[0].mxu0
    %v383 = vadd.f32 0.0, %v382
    %v384 = vpop.f32.mrb[0].mxu0
    %385 = vdwg.mxu0
    %v386 = vsel %vm231, %v383, 0.0
    %v387 = vrot.slane %v386, 4
    %v388 = vadd.f32 %v386, %v387
    %v389 = vrot.slane %v388, 2
    %v390 = vadd.f32 %v388, %v389
    %v391 = vrot.slane %v390, 1
    %v392 = vadd.f32 %v390, %v391
    %v393 = vmul.f32 %v392, 0.03125
    %v394 = vadd.f32 %v393, 1e-05
    %v395 = vrsqrt.pop %v394
    %396 = vmatprep.subr.mxu0 0.0
    %397 = vmatpush1.msra.mxu0 %v66
    %398 = vmatprep.subr.mxu0 0.0
    %399 = vmatpush1.msra.mxu0 %v67
    %400 = vmatprep.subr.mxu0 0.0
    %401 = vmatpush1.msra.mxu0 %v68
    %402 = vmatprep.subr.mxu0 0.0
    %403 = vmatpush1.msra.mxu0 %v69
    %404 = vmatprep.subr.mxu0 0.0
    %405 = vmatpush1.msra.mxu0 %v70
    %406 = vmatprep.subr.mxu0 0.0
    %407 = vmatpush1.msra.mxu0 %v71
    %408 = vmatprep.subr.mxu0 0.0
    %409 = vmatpush1.msra.mxu0 %v72
    %410 = vmatprep.subr.mxu0 0.0
    %411 = vmatpush1.msra.mxu0 %v73
    %412 = vmatprep.subr.mxu0 0.0
    %413 = vmatpush1.msra.mxu0 %v74
    %414 = vmatprep.subr.mxu0 0.0
    %415 = vmatpush1.msra.mxu0 %v75
    %416 = vmatprep.subr.mxu0 0.0
    %417 = vmatpush1.msra.mxu0 %v76
    %418 = vmatprep.subr.mxu0 0.0
    %419 = vmatpush1.msra.mxu0 %v77
    %420 = vmatprep.subr.mxu0 0.0
    %421 = vmatpush1.msra.mxu0 %v78
    %422 = vmatprep.subr.mxu0 0.0
    %423 = vmatpush1.msra.mxu0 %v79
    %424 = vmatprep.subr.mxu0 0.0
    %425 = vmatpush1.msra.mxu0 %v80
    %426 = vmatprep.subr.mxu0 0.0
    %427 = vmatpush1.msra.mxu0 %v81
    %428 = vmatprep.subr.mxu0 0.0
    %429 = vmatpush1.msra.mxu0 0.0
    %430 = vmatprep.subr.mxu0 0.0
    %431 = vmatpush1.msra.mxu0 0.0
    %432 = vmatprep.subr.mxu0 0.0
    %433 = vmatpush1.msra.mxu0 0.0
    %434 = vmatprep.subr.mxu0 0.0
    %435 = vmatpush1.msra.mxu0 0.0
    %436 = vmatprep.subr.mxu0 0.0
    %437 = vmatpush1.msra.mxu0 0.0
    %438 = vmatprep.subr.mxu0 0.0
    %439 = vmatpush1.msra.mxu0 0.0
    %440 = vmatprep.subr.mxu0 0.0
    %441 = vmatpush1.msra.mxu0 0.0
    %442 = vmatprep.subr.mxu0 0.0
    %443 = vmatpush1.msra.mxu0 0.0
    %444 = vmatprep.subr.mxu0 0.0
    %445 = vmatpush1.msra.mxu0 0.0
    %446 = vmatprep.subr.mxu0 0.0
    %447 = vmatpush1.msra.mxu0 0.0
    %448 = vmatprep.subr.mxu0 0.0
    %449 = vmatpush1.msra.mxu0 0.0
    %450 = vmatprep.subr.mxu0 0.0
    %451 = vmatpush1.msra.mxu0 0.0
    %452 = vmatprep.subr.mxu0 0.0
    %453 = vmatpush1.msra.mxu0 0.0
    %454 = vmatprep.subr.mxu0 0.0
    %455 = vmatpush1.msra.mxu0 0.0
    %456 = vmatprep.subr.mxu0 0.0
    %457 = vmatpush1.msra.mxu0 0.0
    %458 = vmatprep.subr.mxu0 0.0
    %459 = vmatpush1.msra.mxu0 0.0
    %460 = vmatprep.mubr.f32.mxu0 0.0
    %461 = vmatmul.mubr.f32.gmra.mrb[0].mxu0 %v395
    %v462 = vpop.f32.mrb[0].mxu0
    %v463 = vadd.f32 0.0, %v462
    %v464 = vpop.f32.mrb[0].mxu0
    %465 = vdwg.mxu0
    %v466 = vlaneseq
    %v467 = vshrl.u32 %v466, 7
    %v468 = vsub.s32 0, %v467
    %v469 = vrot.slane %v463, %v468
    %v470 = vmul.f32 %v314, %v469
    %v471 = vlaneseq
    %v472 = vshrl.u32 %v471, 7
    %v473 = vsub.s32 1, %v472
    %v474 = vrot.slane %v82, %v473
    %v475 = vmul.f32 %v470, %v474
    %v476 = vlaneseq
    %v477 = vshrl.u32 %v476, 7
    %v478 = vsub.s32 2, %v477
    %v479 = vrot.slane %v82, %v478
    %v480 = vadd.f32 %v475, %v479
    %vm481 = vcmp.gt.f32.partialorder %v480, 0.0
    %v482 = vmul.f32 %v480, 0.2
    %v483 = vsel %vm481, %v480, %v482
    %v484 = vlaneseq
    %v485 = vshrl.u32 %v484, 7
    %v486 = vsub.s32 3, %v485
    %v487 = vrot.slane %v82, %v486
    %488 = vmatprep.subr.mxu0 0.0
    %489 = vmatpush1.msra.mxu0 %v34
    %490 = vmatprep.subr.mxu0 0.0
    %491 = vmatpush1.msra.mxu0 %v35
    %492 = vmatprep.subr.mxu0 0.0
    %493 = vmatpush1.msra.mxu0 %v36
    %494 = vmatprep.subr.mxu0 0.0
    %495 = vmatpush1.msra.mxu0 %v37
    %496 = vmatprep.subr.mxu0 0.0
    %497 = vmatpush1.msra.mxu0 %v38
    %498 = vmatprep.subr.mxu0 0.0
    %499 = vmatpush1.msra.mxu0 %v39
    %500 = vmatprep.subr.mxu0 0.0
    %501 = vmatpush1.msra.mxu0 %v40
    %502 = vmatprep.subr.mxu0 0.0
    %503 = vmatpush1.msra.mxu0 %v41
    %504 = vmatprep.subr.mxu0 0.0
    %505 = vmatpush1.msra.mxu0 %v42
    %506 = vmatprep.subr.mxu0 0.0
    %507 = vmatpush1.msra.mxu0 %v43
    %508 = vmatprep.subr.mxu0 0.0
    %509 = vmatpush1.msra.mxu0 %v44
    %510 = vmatprep.subr.mxu0 0.0
    %511 = vmatpush1.msra.mxu0 %v45
    %512 = vmatprep.subr.mxu0 0.0
    %513 = vmatpush1.msra.mxu0 %v46
    %514 = vmatprep.subr.mxu0 0.0
    %515 = vmatpush1.msra.mxu0 %v47
    %516 = vmatprep.subr.mxu0 0.0
    %517 = vmatpush1.msra.mxu0 %v48
    %518 = vmatprep.subr.mxu0 0.0
    %519 = vmatpush1.msra.mxu0 %v49
    %520 = vmatprep.subr.mxu0 0.0
    %521 = vmatpush1.msra.mxu0 0.0
    %522 = vmatprep.subr.mxu0 0.0
    %523 = vmatpush1.msra.mxu0 0.0
    %524 = vmatprep.subr.mxu0 0.0
    %525 = vmatpush1.msra.mxu0 0.0
    %526 = vmatprep.subr.mxu0 0.0
    %527 = vmatpush1.msra.mxu0 0.0
    %528 = vmatprep.subr.mxu0 0.0
    %529 = vmatpush1.msra.mxu0 0.0
    %530 = vmatprep.subr.mxu0 0.0
    %531 = vmatpush1.msra.mxu0 0.0
    %532 = vmatprep.subr.mxu0 0.0
    %533 = vmatpush1.msra.mxu0 0.0
    %534 = vmatprep.subr.mxu0 0.0
    %535 = vmatpush1.msra.mxu0 0.0
    %536 = vmatprep.subr.mxu0 0.0
    %537 = vmatpush1.msra.mxu0 0.0
    %538 = vmatprep.subr.mxu0 0.0
    %539 = vmatpush1.msra.mxu0 0.0
    %540 = vmatprep.subr.mxu0 0.0
    %541 = vmatpush1.msra.mxu0 0.0
    %542 = vmatprep.subr.mxu0 0.0
    %543 = vmatpush1.msra.mxu0 0.0
    %544 = vmatprep.subr.mxu0 0.0
    %545 = vmatpush1.msra.mxu0 0.0
    %546 = vmatprep.subr.mxu0 0.0
    %547 = vmatpush1.msra.mxu0 0.0
    %548 = vmatprep.subr.mxu0 0.0
    %549 = vmatpush1.msra.mxu0 0.0
    %550 = vmatprep.subr.mxu0 0.0
    %551 = vmatpush1.msra.mxu0 0.0
    %552 = vmatprep.mubr.f32.mxu0 0.0
    %553 = vmatmul.mubr.f32.gmra.mrb[0].mxu0 %v483
    %v554 = vpop.f32.mrb[0].mxu0
    %v555 = vadd.f32 %v487, %v554
    %v556 = vpop.f32.mrb[0].mxu0
    %557 = vdwg.mxu0
    %vm558 = vcmp.gt.f32.partialorder %v555, 0.0
    %v559 = vmul.f32 %v555, 0.2
    %v560 = vsel %vm558, %v555, %v559
    %v561 = vlaneseq
    %v562 = vshrl.u32 %v561, 7
    %v563 = vsub.s32 4, %v562
    %v564 = vrot.slane %v82, %v563
    %v565 = vmul.f32 %v560, %v564
    %v566 = vsel %vm231, %v565, 0.0
    %567 = vadd.xlane.f32.xlu0 %v566
    %v568 = vpop.xlane.xlu0 %567
    %v569 = vlaneseq
    %v570 = vshrl.u32 %v569, 7
    %v571 = vsub.s32 5, %v570
    %v572 = vrot.slane %v82, %v571
    %v573 = vadd.f32 %v568, %v572
    %vm574 = vcmp.gt.f32.partialorder %v573, 0.0
    %v575 = vmul.f32 %v573, 0.2
    %v576 = vsel %vm574, %v573, %v575
    %v577 = vsub.f32 0.0, %v576
    %v578 = vmul.f32 %v577, 1.442695
    %v579 = vpow.pop %v578
    %v580 = vadd.f32 %v579, 1.0
    %v581 = vrcp.pop %v580
    %v582 = vmul.f32 1.0, %v581
    %vm583 = vcmask 1024
    %584 = vst.msk [vmem:[%s2] sm:$0x3] %vm583, %v582
    // Predicated region
    $region14: #{_forward.1} parent=1 // pred_check
      _
    $region15: #{_forward.1} parent=1 // pred_check_branch
      %586 = sbr.rel (0) target = $region17
    $region16: #{_forward.1} parent=1 // pred_region
      _
    $region17: #{_forward.1} parent=1 // pred_fallthru
      _
    // Predicated region
    $region18: #{_forward.1} parent=1 // pred_check
      _
    $region19: #{_forward.1} parent=1 // pred_check_branch
      %588 = sbr.rel (0) target = $region21
    $region20: #{_forward.1} parent=1 // pred_region
      _
    $region21: #{_forward.1} parent=1 // pred_fallthru
      _
    %589 = vsyncpa [#allocation3], 1

</llo_original>
